<compile_context>
chip_gen: v5e
topology: v5e:2x2
jax: 0.10.0
libtpu: 0.0.40
codegen_flags: <defaults>
</compile_context>

<pallas_src>
import jax
import jax.numpy as jnp
from jax.experimental import pallas as pl
from jax.experimental.pallas import tpu as pltpu


def _word_embedding_kernel(idx_ref, w_ref, out_ref):
    """Embedding lookup for one token tile, as a one-hot matmul.

    idx_ref : (tile_nt, 1) int32  token indices for this tile
    w_ref   : (V, D)              full embedding table (resident in VMEM)
    out_ref : (tile_nt, D)        gathered embeddings for this tile
    """
    idx = idx_ref[...]                                           # (tile_nt, 1)
    tile_nt = idx.shape[0]
    v = w_ref.shape[0]
    vocab_pos = jax.lax.broadcasted_iota(jnp.int32, (tile_nt, v), dimension=1)
    onehot = (vocab_pos == idx).astype(w_ref.dtype)              # (tile_nt, V)
    out_ref[...] = jnp.dot(
        onehot, w_ref[...], preferred_element_type=jnp.float32
    ).astype(out_ref.dtype)


def word_embedding_pallas(x, w_embed, *, tile_nt=None):
    """out[n, t, :] = w_embed[x[n, t], :]

    Args:
      x:       (N, T) integer indices, 0 <= x[n, t] < V
      w_embed: (V, D) embedding table
    Returns:
      (N, T, D) word vectors.
    """
    n, t = x.shape
    v, d = w_embed.shape
    nt = n * t
    idx = x.reshape(nt, 1).astype(jnp.int32)   # free reshape, no transpose

    # Token-axis tile: whole axis when small (single grid step, zero pipeline
    # overhead), otherwise a sublane-aligned 256-row tile streamed by the grid.
    if tile_nt is None:
        tile_nt = nt if nt <= 256 else 256
    num_tiles = pl.cdiv(nt, tile_nt)

    out_flat = pl.pallas_call(
        _word_embedding_kernel,
        out_shape=jax.ShapeDtypeStruct((nt, d), w_embed.dtype),
        grid_spec=pltpu.PrefetchScalarGridSpec(
            num_scalar_prefetch=0,
            grid=(num_tiles,),
            in_specs=[
                # Per-tile indices.
                pl.BlockSpec((tile_nt, 1), lambda i: (i, 0)),
                # Full table; same block index every step => fetched once,
                # stays resident in VMEM across the grid.
                pl.BlockSpec((v, d), lambda i: (0, 0)),
            ],
            out_specs=pl.BlockSpec((tile_nt, d), lambda i: (i, 0)),
        ),
        compiler_params=pltpu.CompilerParams(
            dimension_semantics=("parallel",),
        ),
    )(idx, w_embed)

    return out_flat.reshape(n, t, d)           # free reshape, no transpose


if __name__ == "__main__":
    # Small shapes consistent with the module: N=2, T=8, V=16, D=32.
    N, T, V, D = 2, 8, 16, 32

    key = jax.random.PRNGKey(0)
    k_w, k_x = jax.random.split(key, 2)

    # Mirrors WordEmbedding.__init__: W_embed ~ randn(V, D) / sqrt(V).
    W_embed = jax.random.normal(k_w, (V, D), dtype=jnp.float32) / jnp.sqrt(V)
    x = jax.random.randint(k_x, (N, T), 0, V, dtype=jnp.int32)

    out = jax.jit(word_embedding_pallas)(x, W_embed)
    out = jax.block_until_ready(out)

    # Pure-JAX reference: W_embed[x] — the one-hot matmul matches exactly
    # (adding zeros does not perturb f32 values).
    out_ref = W_embed[x]
    assert out.shape == (N, T, D)
    assert jnp.allclose(out, out_ref, atol=1e-6, rtol=0.0)

    print("KERNEL_OK")
</pallas_src>

<mosaic_0001>
module attributes {stable_mosaic.version = 11 : i64} {
  func.func @_word_embedding_kernel(%arg0: i32, %arg1: memref<16x1xi32, #tpu.memory_space<vmem>>, %arg2: memref<16x32xf32, #tpu.memory_space<vmem>>, %arg3: memref<16x32xf32, #tpu.memory_space<vmem>>) attributes {dimension_semantics = [#tpu.dimension_semantics<parallel>], iteration_bounds = array<i64: 1>, scalar_prefetch = 0 : i64, scratch_operands = 0 : i64, tpu.core_type = #tpu.core_type<tc>, window_params = [{transform_indices = @transform_0, window_bounds = array<i64: 16, 1>}, {pipeline_mode = #tpu.pipeline_mode<synchronous>, transform_indices = @transform_1, window_bounds = array<i64: 16, 32>}, {transform_indices = @transform_2, window_bounds = array<i64: 16, 32>}]} {
    %c0 = arith.constant 0 : index
    %c0_0 = arith.constant 0 : index
    %0 = vector.load %arg1[%c0, %c0_0] : memref<16x1xi32, #tpu.memory_space<vmem>>, vector<16x1xi32>
    %1 = tpu.iota {dimensions = array<i32: 1>} : vector<16x16xi32>
    %2 = vector.broadcast %0 : vector<16x1xi32> to vector<16x16xi32>
    %3 = arith.cmpi eq, %1, %2 : vector<16x16xi32>
    %4 = arith.extui %3 : vector<16x16xi1> to vector<16x16xi32>
    %5 = arith.sitofp %4 : vector<16x16xi32> to vector<16x16xf32>
    %c0_1 = arith.constant 0 : index
    %c0_2 = arith.constant 0 : index
    %6 = vector.load %arg2[%c0_1, %c0_2] : memref<16x32xf32, #tpu.memory_space<vmem>>, vector<16x32xf32>
    %cst = arith.constant dense<0.000000e+00> : vector<16x32xf32>
    %7 = tpu.matmul %5, %6, %cst {dimension_numbers = #tpu.dot_dimension_numbers<[1], [0], [0], [1], [0, 0, 1, 1], [], []>} : vector<16x16xf32>, vector<16x32xf32>, vector<16x32xf32> -> vector<16x32xf32>
    %c0_3 = arith.constant 0 : index
    %c0_4 = arith.constant 0 : index
    %8 = vector.load %arg3[%c0_3, %c0_4] : memref<16x32xf32, #tpu.memory_space<vmem>>, vector<16x32xf32>
    tpu.vector_store %arg3[%c0_3, %c0_4], %7 {strides = array<i32>} : memref<16x32xf32, #tpu.memory_space<vmem>>, vector<16x32xf32>,
    return
  }
  func.func @transform_0(%arg0: i32) -> (i32, i32) {
    %c0_i32 = arith.constant 0 : i32
    %c0_i32_0 = arith.constant 0 : i32
    return %arg0, %c0_i32 : i32, i32
  }
  func.func @transform_1(%arg0: i32) -> (i32, i32) {
    %c0_i32 = arith.constant 0 : i32
    %c0_i32_0 = arith.constant 0 : i32
    %c0_i32_1 = arith.constant 0 : i32
    return %c0_i32, %c0_i32_0 : i32, i32
  }
  func.func @transform_2(%arg0: i32) -> (i32, i32) {
    %c0_i32 = arith.constant 0 : i32
    %c0_i32_0 = arith.constant 0 : i32
    return %arg0, %c0_i32 : i32, i32
  }
}

</mosaic_0001>

<llo_original>
// kernel: word_embedding_pallas.1
$region0: #{word_embedding_pallas.1}
  #allocation0 [shape = 'u32[]', space=smem, size = 0x4, offset = 0x4, fixed_abs, tag = 'smem constant byte address 0x4 - core index']
  #allocation1 [shape = 'u32[72,128]{1,0:T(1,128)}', space=vmem, size = 0x9000, scoped, tag = 'internal scratch']
  %s0 = inlined_call_operand.vmem [shape: s32[16,1], index: 0, kind: input, shape index: {}]
  %s1 = inlined_call_operand.vmem [shape: f32[16,32], index: 1, kind: input, shape index: {}]
  %s2 = inlined_call_operand.hbm [shape: f32[16,32], index: 2, kind: output, shape index: {}]
  %s3 = sld [smem:[#allocation0]]
  $region18: #{word_embedding_pallas.1} parent=0
    _
  %s5 = ssub.s32 1, %s3
  %s6 = scalar_select 0, %s5, %s3
  $region1: #{word_embedding_pallas.1} parent=0
    #allocation2 [shape = 'u8[8192]{0}', space=vmem, size = 0x2000, scoped, tag = 'output window, operand 0, single buffered']
    #allocation3 [shape = 's32[1]{0}', space=sflag, size = 0x4, scoped, tag = 'scoped memory for word_embedding_pallas.1']
    %7 = vsyncpa [#allocation3], 0
    // Predicated region
    $region2: #{word_embedding_pallas.1} parent=1 // pred_check
      _
    $region3: #{word_embedding_pallas.1} parent=1 // pred_check_branch
      %9 = sbr.rel (0) target = $region5
    $region4: #{word_embedding_pallas.1} parent=1 // pred_region
      _
    $region5: #{word_embedding_pallas.1} parent=1 // pred_fallthru
      _
    // Predicated region
    $region6: #{word_embedding_pallas.1} parent=1 // pred_check
      _
    $region7: #{word_embedding_pallas.1} parent=1 // pred_check_branch
      %11 = sbr.rel (0) target = $region9
    $region8: #{word_embedding_pallas.1} parent=1 // pred_region
      _
    $region9: #{word_embedding_pallas.1} parent=1 // pred_fallthru
      _
    %v12 = vld [vmem:[%s0] sm:$0xff]
    %v13 = vld [vmem:[%s0 + $0x8] sm:$0xff]
    %v14 = vlaneseq
    %v15 = vand.u32 %v14, 127
    %16 = vset.pattern.permute.xlu0 0
    %17 = vperm.xlu0 %16, %v12
    %v18 = vpop.permute.xlu0 %17
    %19 = vset.pattern.permute.xlu0 0
    %20 = vperm.xlu0 %19, %v13
    %v21 = vpop.permute.xlu0 %20
    %vm22 = vcmp.eq.s32.totalorder %v15, %v18
    %vm23 = vcmp.eq.s32.totalorder %v15, %v21
    %v24 = vsel %vm22, 1, 0
    %v25 = vsel %vm23, 1, 0
    %v26 = vcvt.s32.f32 %v24
    %v27 = vcvt.s32.f32 %v25
    %v28 = vld [vmem:[%s1] sm:$0xff]
    %v29 = vld [vmem:[%s1 + $0x8] sm:$0xff]
    %vm30 = vcmask 130048
    %v32 = vsel %vm30, %v26, 0
    %v35 = vsel %vm30, %v27, 0
    %37 = vmatpush.msra.mxu0 0.0
    %38 = vmatpush.msra.mxu0 0.0
    %39 = vmatpush.msra.mxu0 0.0
    %40 = vmatpush.msra.mxu0 0.0
    %41 = vmatpush.msra.mxu0 0.0
    %42 = vmatpush.msra.mxu0 0.0
    %43 = vmatpush.msra.mxu0 0.0
    %44 = vmatpush.msra.mxu0 0.0
    %45 = vmatpush.msra.mxu0 0.0
    %46 = vmatpush.msra.mxu0 0.0
    %47 = vmatpush.msra.mxu0 0.0
    %48 = vmatpush.msra.mxu0 0.0
    %49 = vmatpush.msra.mxu0 0.0
    %50 = vmatpush.msra.mxu0 0.0
    %51 = vmatpush.msra.mxu0 %v29
    %52 = vmatpush.msra.mxu0 %v28
    %53 = vmatmul.f32.gmra.mxu0 %v32
    %v54 = vpop.f32.mrf.mxu0
    %v55 = vadd.f32 0.0, %v54
    %56 = vmatmul.f32.gmra.mxu0 %v35
    %v57 = vpop.f32.mrf.mxu0
    %v58 = vadd.f32 0.0, %v57
    %59 = vdwg.mxu0
    %vm60 = vcmask 261120
    %61 = vst.msk [vmem:[#allocation2] sm:$0xff] %vm60, %v55
    %62 = vst.msk [vmem:[#allocation2 + $0x8] sm:$0xff] %vm60, %v58
    // Predicated region
    $region10: #{word_embedding_pallas.1} parent=1 // pred_check
      _
    $region11: #{word_embedding_pallas.1} parent=1 // pred_check_branch
      %64 = sbr.rel (0) target = $region13
    $region12: #{word_embedding_pallas.1} parent=1 // pred_region
      %66 = vsyncadd [#allocation3], 0
      %s67 = sshll.u32 [#allocation2], 4
      %s68 = int_to_ptr.vmem [resolvable:$true] %s67
      %s69 = sshll.u32 %s2, 4
      %s70 = int_to_ptr.hbm [resolvable:$true] %s69
      %75 = dma.vmem_to_hbm [thread:$0]  %s68, 256, %s70, [#allocation3], 128, 128, 8
    $region13: #{word_embedding_pallas.1} parent=1 // pred_fallthru
      _
    // Predicated region
    $region14: #{word_embedding_pallas.1} parent=1 // pred_check
      _
    $region15: #{word_embedding_pallas.1} parent=1 // pred_check_branch
      %77 = sbr.rel (0) target = $region17
    $region16: #{word_embedding_pallas.1} parent=1 // pred_region
      %79 = dma.done [#allocation3], 256
    $region17: #{word_embedding_pallas.1} parent=1 // pred_fallthru
      _
    %80 = vsyncpa [#allocation3], 1

</llo_original>
